<compile_context>
chip_gen: v5e
topology: v5e:2x2
jax: 0.10.0
libtpu: 0.0.40
codegen_flags: <defaults>
</compile_context>

<pallas_src>
import numpy as np
import jax
import jax.numpy as jnp
from jax import lax
from jax.experimental import pallas as pl
from jax.experimental.pallas import tpu as pltpu


# ------------------------------ Pallas kernel ------------------------------

def _make_grad_l1_kernel(n_img, h, w, n_total, needs_mask, use_partials):
    """Kernel over one (n_img, h, w) block of pred and target."""

    def kernel(x_ref, y_ref, out_ref):
        # Load in native dtype, upcast to f32 for exact shift-and-add arithmetic.
        d = x_ref[...].astype(jnp.float32) - y_ref[...].astype(jnp.float32)

        # Vertical taps with zero padding folded into a row decomposition.
        #   sm[i, j] = d[i-1, j] + 2*d[i, j] + d[i+1, j]   (zero outside)
        #   dv[i, j] = d[i-1, j] - d[i+1, j]
        sm = jnp.concatenate([
            2.0 * d[:, 0:1, :] + d[:, 1:2, :],                        # row 0
            d[:, 0:h - 2, :] + 2.0 * d[:, 1:h - 1, :] + d[:, 2:h, :],  # rows 1..h-2
            d[:, h - 2:h - 1, :] + 2.0 * d[:, h - 1:h, :],             # row h-1
        ], axis=1)
        dv = jnp.concatenate([
            -d[:, 1:2, :],
            d[:, 0:h - 2, :] - d[:, 2:h, :],
            d[:, h - 2:h - 1, :],
        ], axis=1)

        # Horizontal taps with zero padding folded into a column decomposition.
        #   gx[i, j] = sm[i, j-1] - sm[i, j+1]
        #   gy[i, j] = dv[i, j-1] + 2*dv[i, j] + dv[i, j+1]
        gx_m = sm[:, :, 0:w - 2] - sm[:, :, 2:w]                             # cols 1..w-2
        gy_m = dv[:, :, 0:w - 2] + 2.0 * dv[:, :, 1:w - 1] + dv[:, :, 2:w]
        gx_l = -sm[:, :, 1:2]                                                # col 0
        gy_l = 2.0 * dv[:, :, 0:1] + dv[:, :, 1:2]
        gx_r = sm[:, :, w - 2:w - 1]                                         # col w-1
        gy_r = dv[:, :, w - 2:w - 1] + 2.0 * dv[:, :, w - 1:w]

        # |gx| + |gy|, interior piece first so the big slab stays lane-aligned
        # (column order is irrelevant: everything is summed).
        absum = jnp.concatenate([
            jnp.abs(gx_m) + jnp.abs(gy_m),
            jnp.abs(gx_l) + jnp.abs(gy_l),
            jnp.abs(gx_r) + jnp.abs(gy_r),
        ], axis=2)                                                           # (n_img, h, w)

        if needs_mask:
            # Tail block of a non-dividing grid: zero out-of-range images.
            img = (pl.program_id(0) * n_img
                   + lax.broadcasted_iota(jnp.int32, absum.shape, 0))
            absum = jnp.where(img < n_total, absum, 0.0)

        if use_partials:
            # Per-(sublane, lane) partial sums: reduce over images and fold the H
            # axis 8 rows at a time -- pure elementwise VPU adds, no XLU tail.
            rowsum = jnp.sum(absum, axis=0)                 # (h, w)
            part = rowsum[0:8, :]
            for k in range(1, h // 8):
                part = part + rowsum[8 * k:8 * (k + 1), :]   # (8, w)
            out_ref[...] = jnp.zeros(out_ref.shape, jnp.float32)
            out_ref[0:1, :, 0:w] = part.reshape(1, 8, w)
        else:
            # Fallback (H not a multiple of 8 or W > 128): per-block scalar,
            # broadcast as one full unmasked (8,128) store.
            s = jnp.sum(absum)
            out_ref[...] = jnp.full(out_ref.shape, s, jnp.float32)

    return kernel


# ------------------------------ tiling heuristics ------------------------------

def _vmem_budget():
    """(input-block budget bytes, vmem_limit_bytes) per TPU generation."""
    try:
        cap = pltpu.get_tpu_info().vmem_capacity_bytes
    except Exception:
        cap = None
    mib = 1024 * 1024
    if cap is not None and cap <= 80 * mib:
        # v7x-class: 64 MiB physical VMEM.  ~7-8x multiplier on the input block
        # (2 inputs x 2 pipeline buffers + f32 temporaries) -> cap block ~5 MiB.
        return 5 * mib, 44 * mib
    if cap is not None:
        # v5e / v6e: 128 MiB physical VMEM.
        return 8 * mib, 96 * mib
    # Unknown device: conservative but still much larger than the old 2 MiB cap,
    # and safe on every generation.
    return 4 * mib, 40 * mib


def _pick_images_per_step(n, h, w, block_budget):
    """Images per grid step: as large as the VMEM budget allows, but keep >= 4 grid
    steps when possible (v7x megacore split + pipeline prefetch); prefer an exact
    divisor of n (no masked tail) when one is nearby."""
    per_image = h * w * 4          # budget in f32 terms (covers the f32 temporaries)
    cap = max(1, min(n, block_budget // per_image, n // min(4, n)))
    for d in range(cap, max(1, cap // 2) - 1, -1):
        if n % d == 0:
            return d
    return cap


# ------------------------------ public wrapper ------------------------------

def grad_l1_loss_pallas(pred, target):
    """Pallas implementation of GradL1Loss.forward (mask=None). pred/target: (B,C,H,W)."""
    assert pred.shape == target.shape and pred.ndim == 4
    b, c, h, w = pred.shape
    assert h >= 3 and w >= 3, "GradL1 Pallas kernel requires H >= 3 and W >= 3"
    n = b * c

    # Keep the original dtype: no wrapper-side f32 cast (saves HBM traffic for bf16).
    x = pred.reshape(n, h, w)
    y = target.reshape(n, h, w)

    block_budget, vmem_limit = _vmem_budget()
    n_img = _pick_images_per_step(n, h, w, block_budget)
    g = pl.cdiv(n, n_img)
    needs_mask = (g * n_img != n)
    use_partials = (w <= 128) and (h % 8 == 0)

    out = pl.pallas_call(
        _make_grad_l1_kernel(n_img, h, w, n, needs_mask, use_partials),
        out_shape=jax.ShapeDtypeStruct((g, 8, 128), jnp.float32),
        grid=(g,),
        in_specs=[
            pl.BlockSpec((n_img, h, w), lambda i: (i, 0, 0)),
            pl.BlockSpec((n_img, h, w), lambda i: (i, 0, 0)),
        ],
        out_specs=pl.BlockSpec((1, 8, 128), lambda i: (i, 0, 0)),
        compiler_params=pltpu.CompilerParams(
            dimension_semantics=("parallel",),
            vmem_limit_bytes=int(vmem_limit)),
    )(x, y)

    total = jnp.sum(out) if use_partials else jnp.sum(out[:, 0, 0])
    # mean|grad_x diff| + mean|grad_y diff| share the same element count B*C*H*W.
    return total / float(n * h * w)


# ------------------------------ pure-JAX reference ------------------------------

def grad_l1_loss_ref(pred, target):
    """Faithful port of the PyTorch module (cross-correlation, padding=1, mask=None)."""
    def grad_x(img):
        p = jnp.pad(img.astype(jnp.float32), ((0, 0), (0, 0), (1, 1), (1, 1)))
        sm = p[:, :, 0:-2, :] + 2.0 * p[:, :, 1:-1, :] + p[:, :, 2:, :]
        return sm[:, :, :, 0:-2] - sm[:, :, :, 2:]

    def grad_y(img):
        p = jnp.pad(img.astype(jnp.float32), ((0, 0), (0, 0), (1, 1), (1, 1)))
        dv = p[:, :, 0:-2, :] - p[:, :, 2:, :]
        return dv[:, :, :, 0:-2] + 2.0 * dv[:, :, :, 1:-1] + dv[:, :, :, 2:]

    gx = jnp.abs(grad_x(pred) - grad_x(target))
    gy = jnp.abs(grad_y(pred) - grad_y(target))
    return jnp.mean(gx) + jnp.mean(gy)


if __name__ == "__main__":
    key = jax.random.PRNGKey(0)
    k1, k2 = jax.random.split(key)
    # depth-like inputs
    pred = jax.random.uniform(k1, (2, 4, 16, 16), jnp.float32, minval=0.001, maxval=10.0)
    target = jax.random.uniform(k2, (2, 4, 16, 16), jnp.float32, minval=0.001, maxval=10.0)

    loss = jax.block_until_ready(grad_l1_loss_pallas(pred, target))
    loss_ref = jax.block_until_ready(grad_l1_loss_ref(pred, target))

    np.testing.assert_allclose(np.asarray(loss), np.asarray(loss_ref),
                               rtol=1e-4, atol=1e-4)
    print("KERNEL_OK")
</pallas_src>

<mosaic_0001>
module attributes {stable_mosaic.version = 11 : i64} {
  func.func @kernel(%arg0: i32, %arg1: memref<2x16x16xf32, #tpu.memory_space<vmem>>, %arg2: memref<2x16x16xf32, #tpu.memory_space<vmem>>, %arg3: memref<1x8x128xf32, #tpu.memory_space<vmem>>) attributes {dimension_semantics = [#tpu.dimension_semantics<parallel>], iteration_bounds = array<i64: 4>, scalar_prefetch = 0 : i64, scratch_operands = 0 : i64, tpu.core_type = #tpu.core_type<tc>, window_params = [{transform_indices = @transform_0, window_bounds = array<i64: 2, 16, 16>}, {transform_indices = @transform_1, window_bounds = array<i64: 2, 16, 16>}, {transform_indices = @transform_2, window_bounds = array<i64: 1, 8, 128>}]} {
    %c0 = arith.constant 0 : index
    %c0_0 = arith.constant 0 : index
    %c0_1 = arith.constant 0 : index
    %0 = vector.load %arg1[%c0, %c0_0, %c0_1] : memref<2x16x16xf32, #tpu.memory_space<vmem>>, vector<2x16x16xf32>
    %c0_2 = arith.constant 0 : index
    %c0_3 = arith.constant 0 : index
    %c0_4 = arith.constant 0 : index
    %1 = vector.load %arg2[%c0_2, %c0_3, %c0_4] : memref<2x16x16xf32, #tpu.memory_space<vmem>>, vector<2x16x16xf32>
    %2 = arith.subf %0, %1 : vector<2x16x16xf32>
    %3 = vector.extract_strided_slice %2 {offsets = [0, 0, 0], sizes = [2, 1, 16], strides = [1, 1, 1]} : vector<2x16x16xf32> to vector<2x1x16xf32>
    %cst = arith.constant 2.000000e+00 : f32
    %4 = vector.broadcast %cst : f32 to vector<2x1x16xf32>
    %5 = arith.mulf %4, %3 : vector<2x1x16xf32>
    %6 = vector.extract_strided_slice %2 {offsets = [0, 1, 0], sizes = [2, 1, 16], strides = [1, 1, 1]} : vector<2x16x16xf32> to vector<2x1x16xf32>
    %7 = arith.addf %5, %6 : vector<2x1x16xf32>
    %8 = vector.extract_strided_slice %2 {offsets = [0, 0, 0], sizes = [2, 14, 16], strides = [1, 1, 1]} : vector<2x16x16xf32> to vector<2x14x16xf32>
    %9 = vector.extract_strided_slice %2 {offsets = [0, 1, 0], sizes = [2, 14, 16], strides = [1, 1, 1]} : vector<2x16x16xf32> to vector<2x14x16xf32>
    %cst_5 = arith.constant 2.000000e+00 : f32
    %10 = vector.broadcast %cst_5 : f32 to vector<2x14x16xf32>
    %11 = arith.mulf %10, %9 : vector<2x14x16xf32>
    %12 = arith.addf %8, %11 : vector<2x14x16xf32>
    %13 = vector.extract_strided_slice %2 {offsets = [0, 2, 0], sizes = [2, 14, 16], strides = [1, 1, 1]} : vector<2x16x16xf32> to vector<2x14x16xf32>
    %14 = arith.addf %12, %13 : vector<2x14x16xf32>
    %15 = vector.extract_strided_slice %2 {offsets = [0, 14, 0], sizes = [2, 1, 16], strides = [1, 1, 1]} : vector<2x16x16xf32> to vector<2x1x16xf32>
    %16 = vector.extract_strided_slice %2 {offsets = [0, 15, 0], sizes = [2, 1, 16], strides = [1, 1, 1]} : vector<2x16x16xf32> to vector<2x1x16xf32>
    %cst_6 = arith.constant 2.000000e+00 : f32
    %17 = vector.broadcast %cst_6 : f32 to vector<2x1x16xf32>
    %18 = arith.mulf %17, %16 : vector<2x1x16xf32>
    %19 = arith.addf %15, %18 : vector<2x1x16xf32>
    %20 = tpu.concatenate %7, %14, %19 in 1 : vector<2x1x16xf32>, vector<2x14x16xf32>, vector<2x1x16xf32> -> vector<2x16x16xf32>
    %21 = vector.extract_strided_slice %2 {offsets = [0, 1, 0], sizes = [2, 1, 16], strides = [1, 1, 1]} : vector<2x16x16xf32> to vector<2x1x16xf32>
    %cst_7 = arith.constant 0.000000e+00 : f32
    %22 = vector.broadcast %cst_7 : f32 to vector<2x1x16xf32>
    %23 = arith.subf %22, %21 : vector<2x1x16xf32>
    %24 = vector.extract_strided_slice %2 {offsets = [0, 0, 0], sizes = [2, 14, 16], strides = [1, 1, 1]} : vector<2x16x16xf32> to vector<2x14x16xf32>
    %25 = vector.extract_strided_slice %2 {offsets = [0, 2, 0], sizes = [2, 14, 16], strides = [1, 1, 1]} : vector<2x16x16xf32> to vector<2x14x16xf32>
    %26 = arith.subf %24, %25 : vector<2x14x16xf32>
    %27 = vector.extract_strided_slice %2 {offsets = [0, 14, 0], sizes = [2, 1, 16], strides = [1, 1, 1]} : vector<2x16x16xf32> to vector<2x1x16xf32>
    %28 = tpu.concatenate %23, %26, %27 in 1 : vector<2x1x16xf32>, vector<2x14x16xf32>, vector<2x1x16xf32> -> vector<2x16x16xf32>
    %29 = vector.extract_strided_slice %20 {offsets = [0, 0, 0], sizes = [2, 16, 14], strides = [1, 1, 1]} : vector<2x16x16xf32> to vector<2x16x14xf32>
    %30 = vector.extract_strided_slice %20 {offsets = [0, 0, 2], sizes = [2, 16, 14], strides = [1, 1, 1]} : vector<2x16x16xf32> to vector<2x16x14xf32>
    %31 = arith.subf %29, %30 : vector<2x16x14xf32>
    %32 = vector.extract_strided_slice %28 {offsets = [0, 0, 0], sizes = [2, 16, 14], strides = [1, 1, 1]} : vector<2x16x16xf32> to vector<2x16x14xf32>
    %33 = vector.extract_strided_slice %28 {offsets = [0, 0, 1], sizes = [2, 16, 14], strides = [1, 1, 1]} : vector<2x16x16xf32> to vector<2x16x14xf32>
    %cst_8 = arith.constant 2.000000e+00 : f32
    %34 = vector.broadcast %cst_8 : f32 to vector<2x16x14xf32>
    %35 = arith.mulf %34, %33 : vector<2x16x14xf32>
    %36 = arith.addf %32, %35 : vector<2x16x14xf32>
    %37 = vector.extract_strided_slice %28 {offsets = [0, 0, 2], sizes = [2, 16, 14], strides = [1, 1, 1]} : vector<2x16x16xf32> to vector<2x16x14xf32>
    %38 = arith.addf %36, %37 : vector<2x16x14xf32>
    %39 = vector.extract_strided_slice %20 {offsets = [0, 0, 1], sizes = [2, 16, 1], strides = [1, 1, 1]} : vector<2x16x16xf32> to vector<2x16x1xf32>
    %cst_9 = arith.constant 0.000000e+00 : f32
    %40 = vector.broadcast %cst_9 : f32 to vector<2x16x1xf32>
    %41 = arith.subf %40, %39 : vector<2x16x1xf32>
    %42 = vector.extract_strided_slice %28 {offsets = [0, 0, 0], sizes = [2, 16, 1], strides = [1, 1, 1]} : vector<2x16x16xf32> to vector<2x16x1xf32>
    %cst_10 = arith.constant 2.000000e+00 : f32
    %43 = vector.broadcast %cst_10 : f32 to vector<2x16x1xf32>
    %44 = arith.mulf %43, %42 : vector<2x16x1xf32>
    %45 = vector.extract_strided_slice %28 {offsets = [0, 0, 1], sizes = [2, 16, 1], strides = [1, 1, 1]} : vector<2x16x16xf32> to vector<2x16x1xf32>
    %46 = arith.addf %44, %45 : vector<2x16x1xf32>
    %47 = vector.extract_strided_slice %20 {offsets = [0, 0, 14], sizes = [2, 16, 1], strides = [1, 1, 1]} : vector<2x16x16xf32> to vector<2x16x1xf32>
    %48 = vector.extract_strided_slice %28 {offsets = [0, 0, 14], sizes = [2, 16, 1], strides = [1, 1, 1]} : vector<2x16x16xf32> to vector<2x16x1xf32>
    %49 = vector.extract_strided_slice %28 {offsets = [0, 0, 15], sizes = [2, 16, 1], strides = [1, 1, 1]} : vector<2x16x16xf32> to vector<2x16x1xf32>
    %cst_11 = arith.constant 2.000000e+00 : f32
    %50 = vector.broadcast %cst_11 : f32 to vector<2x16x1xf32>
    %51 = arith.mulf %50, %49 : vector<2x16x1xf32>
    %52 = arith.addf %48, %51 : vector<2x16x1xf32>
    %53 = math.absf %31 : vector<2x16x14xf32>
    %54 = math.absf %38 : vector<2x16x14xf32>
    %55 = arith.addf %53, %54 : vector<2x16x14xf32>
    %56 = math.absf %41 : vector<2x16x1xf32>
    %57 = math.absf %46 : vector<2x16x1xf32>
    %58 = arith.addf %56, %57 : vector<2x16x1xf32>
    %59 = math.absf %47 : vector<2x16x1xf32>
    %60 = math.absf %52 : vector<2x16x1xf32>
    %61 = arith.addf %59, %60 : vector<2x16x1xf32>
    %62 = tpu.concatenate %55, %58, %61 in 2 : vector<2x16x14xf32>, vector<2x16x1xf32>, vector<2x16x1xf32> -> vector<2x16x16xf32>
    %cst_12 = arith.constant dense<0.000000e+00> : vector<16x16xf32>
    %63 = vector.multi_reduction <add>, %62, %cst_12 [0] : vector<2x16x16xf32> to vector<16x16xf32>
    %64 = vector.extract_strided_slice %63 {offsets = [0, 0], sizes = [8, 16], strides = [1, 1]} : vector<16x16xf32> to vector<8x16xf32>
    %65 = vector.extract_strided_slice %63 {offsets = [8, 0], sizes = [8, 16], strides = [1, 1]} : vector<16x16xf32> to vector<8x16xf32>
    %66 = arith.addf %64, %65 : vector<8x16xf32>
    %cst_13 = arith.constant 0.000000e+00 : f32
    %67 = vector.broadcast %cst_13 : f32 to vector<1x8x128xf32>
    %c0_14 = arith.constant 0 : index
    %c0_15 = arith.constant 0 : index
    %c0_16 = arith.constant 0 : index
    %68 = vector.load %arg3[%c0_14, %c0_15, %c0_16] : memref<1x8x128xf32, #tpu.memory_space<vmem>>, vector<1x8x128xf32>
    tpu.vector_store %arg3[%c0_14, %c0_15, %c0_16], %67 {strides = array<i32>} : memref<1x8x128xf32, #tpu.memory_space<vmem>>, vector<1x8x128xf32>,
    %69 = vector.shape_cast %66 : vector<8x16xf32> to vector<1x8x16xf32>
    %c0_17 = arith.constant 0 : index
    %c0_18 = arith.constant 0 : index
    %c0_19 = arith.constant 0 : index
    %70 = vector.load %arg3[%c0_17, %c0_18, %c0_19] : memref<1x8x128xf32, #tpu.memory_space<vmem>>, vector<1x8x16xf32>
    tpu.vector_store %arg3[%c0_17, %c0_18, %c0_19], %69 {strides = array<i32>} : memref<1x8x128xf32, #tpu.memory_space<vmem>>, vector<1x8x16xf32>,
    return
  }
  func.func @transform_0(%arg0: i32) -> (i32, i32, i32) {
    %c0_i32 = arith.constant 0 : i32
    %c0_i32_0 = arith.constant 0 : i32
    %c0_i32_1 = arith.constant 0 : i32
    return %arg0, %c0_i32, %c0_i32_0 : i32, i32, i32
  }
  func.func @transform_1(%arg0: i32) -> (i32, i32, i32) {
    %c0_i32 = arith.constant 0 : i32
    %c0_i32_0 = arith.constant 0 : i32
    %c0_i32_1 = arith.constant 0 : i32
    return %arg0, %c0_i32, %c0_i32_0 : i32, i32, i32
  }
  func.func @transform_2(%arg0: i32) -> (i32, i32, i32) {
    %c0_i32 = arith.constant 0 : i32
    %c0_i32_0 = arith.constant 0 : i32
    %c0_i32_1 = arith.constant 0 : i32
    return %arg0, %c0_i32, %c0_i32_0 : i32, i32, i32
  }
}

</mosaic_0001>

<llo_original>
// kernel: tpu_custom_call.1
$region0: #{tpu_custom_call.1}
  #allocation0 [shape = 'u32[]', space=smem, size = 0x4, offset = 0x4, fixed_abs, tag = 'smem constant byte address 0x4 - core index']
  #allocation1 [shape = 'u32[72,128]{1,0:T(1,128)}', space=vmem, size = 0x9000, scoped, tag = 'internal scratch']
  %s0 = inlined_call_operand.hbm [shape: f32[8,16,16], index: 0, kind: input, shape index: {}]
  %s1 = inlined_call_operand.hbm [shape: f32[8,16,16], index: 1, kind: input, shape index: {}]
  %s2 = inlined_call_operand.hbm [shape: f32[4,8,128], index: 2, kind: output, shape index: {}]
  %s3 = sld [smem:[#allocation0]]
  $region49: #{tpu_custom_call.1} parent=0
    _
  %s5 = ssub.s32 1, %s3
  %s6 = scalar_select 0, %s5, %s3
  $region1: #{tpu_custom_call.1} parent=0
    #allocation2 [shape = 'u8[32768]{0}', space=vmem, size = 0x8000, scoped, tag = 'input window, operand 0']
    #allocation3 [shape = 's32[2]{0}', space=sflag, size = 0x8, scoped, tag = 'scoped memory for tpu_custom_call.1']
    #allocation4 [shape = 's32[2]{0}', space=sflag, size = 0x8, scoped, tag = 'scoped memory for tpu_custom_call.1']
    #allocation5 [shape = 'u8[32768]{0}', space=vmem, size = 0x8000, scoped, tag = 'input window, operand 1']
    #allocation6 [shape = 's32[2]{0}', space=sflag, size = 0x8, scoped, tag = 'scoped memory for tpu_custom_call.1']
    #allocation7 [shape = 'u8[8192]{0}', space=vmem, size = 0x2000, scoped, tag = 'output window, operand 0']
    %7 = vsyncpa [#allocation3], 0
    %s8 = scalar_lea.sflag [#allocation3], 1
    %9 = vsyncpa %s8, 0
    %10 = vsyncpa [#allocation6], 0
    %s11 = scalar_lea.sflag [#allocation6], 1
    %12 = vsyncpa %s11, 0
    %13 = vsyncpa [#allocation4], 0
    %s14 = scalar_lea.sflag [#allocation4], 1
    %15 = vsyncpa %s14, 0
    loop: start=0, step=1, limit=6
    $region2: #{tpu_custom_call.1} parent=1 // loop_pre_header
      _
    $region3: #{tpu_custom_call.1} parent=1 // loop_header
      %s17 = sphi 0, %s21
      %p18 = scmp.ge.s32.totalorder %s17, 6
      %s27 = sphi 0, %s29
      %s30 = sphi 0, %s27
      %s31 = sphi 0, %s30
      %s47 = sphi 0, %s31
      %s53 = sphi 0, %s55
      %s56 = sphi 0, %s53
      %s57 = sphi 0, %s56
      %s73 = sphi 0, %s57
      %s79 = sphi 0, %s81
      %s82 = sphi 0, %s79
      %s83 = sphi 0, %s82
      %s99 = sphi 0, %s83
    $region4: #{tpu_custom_call.1} parent=1 // loop_header_branch
      %20 = sbr.rel (%p18) target = $region8
    $region5: #{tpu_custom_call.1} parent=1 // loop_body
      %s22 = ssub.s32 %s17, 1
      %s23 = ssub.s32 %s17, 2
      %s24 = sadd.s32 %s17, 1
      %s25 = ssub.s32 %s17, %s24
      %p26 = scmp.eq.s32.totalorder %s25, 0
      %s28 = sadd.s32 %s27, 1
      %s29 = scalar_select %p26, %s27, %s28
      %p32 = pneg %p26
      %p33 = scmp.eq.s32.totalorder %s17, 3
      %p34 = por %p32, %p33
      %p35 = scmp.ne.s32.totalorder %s27, %s30
      %p36 = scmp.eq.s32.totalorder %s17, 0
      %p37 = por %p35, %p36
      %p38 = scmp.ne.s32.totalorder %s27, %s30
      %p39 = scmp.eq.s32.totalorder %s22, 3
      %p40 = por %p38, %p39
      %p41 = scmp.ne.s32.totalorder %s30, %s31
      %p42 = scmp.eq.s32.totalorder %s22, 0
      %p43 = por %p41, %p42
      %p44 = scmp.ne.s32.totalorder %s30, %s31
      %p45 = scmp.eq.s32.totalorder %s23, 3
      %p46 = por %p44, %p45
      %p48 = scmp.ne.s32.totalorder %s31, %s47
      %p49 = scmp.eq.s32.totalorder %s23, 0
      %p50 = por %p48, %p49
      %s51 = ssub.s32 %s17, %s24
      %p52 = scmp.eq.s32.totalorder %s51, 0
      %s54 = sadd.s32 %s53, 1
      %s55 = scalar_select %p52, %s53, %s54
      %p58 = pneg %p52
      %p59 = scmp.eq.s32.totalorder %s17, 3
      %p60 = por %p58, %p59
      %p61 = scmp.ne.s32.totalorder %s53, %s56
      %p62 = scmp.eq.s32.totalorder %s17, 0
      %p63 = por %p61, %p62
      %p64 = scmp.ne.s32.totalorder %s53, %s56
      %p65 = scmp.eq.s32.totalorder %s22, 3
      %p66 = por %p64, %p65
      %p67 = scmp.ne.s32.totalorder %s56, %s57
      %p68 = scmp.eq.s32.totalorder %s22, 0
      %p69 = por %p67, %p68
      %p70 = scmp.ne.s32.totalorder %s56, %s57
      %p71 = scmp.eq.s32.totalorder %s23, 3
      %p72 = por %p70, %p71
      %p74 = scmp.ne.s32.totalorder %s57, %s73
      %p75 = scmp.eq.s32.totalorder %s23, 0
      %p76 = por %p74, %p75
      %s77 = ssub.s32 %s17, %s24
      %p78 = scmp.eq.s32.totalorder %s77, 0
      %s80 = sadd.s32 %s79, 1
      %s81 = scalar_select %p78, %s79, %s80
      %p84 = pneg %p78
      %p85 = scmp.eq.s32.totalorder %s17, 3
      %p86 = por %p84, %p85
      %p87 = scmp.ne.s32.totalorder %s79, %s82
      %p88 = scmp.eq.s32.totalorder %s17, 0
      %p89 = por %p87, %p88
      %p90 = scmp.ne.s32.totalorder %s79, %s82
      %p91 = scmp.eq.s32.totalorder %s22, 3
      %p92 = por %p90, %p91
      %p93 = scmp.ne.s32.totalorder %s82, %s83
      %p94 = scmp.eq.s32.totalorder %s22, 0
      %p95 = por %p93, %p94
      %p96 = scmp.ne.s32.totalorder %s82, %s83
      %p97 = scmp.eq.s32.totalorder %s23, 3
      %p98 = por %p96, %p97
      %p100 = scmp.ne.s32.totalorder %s83, %s99
      %p101 = scmp.eq.s32.totalorder %s23, 0
      %p102 = por %p100, %p101
      %p103 = scmp.le.s32.totalorder 1, %s17
      %p104 = scmp.lt.s32.totalorder %s17, 5
      %p105 = pnand %p103, %p104
      %p106 = pneg %p105
      // Predicated region
      $region9: #{tpu_custom_call.1} parent=5 // pred_check
        _
      $region10: #{tpu_custom_call.1} parent=5 // pred_check_branch
        %108 = sbr.rel (%p105) target = $region12
      $region11: #{tpu_custom_call.1} parent=5 // pred_region
        %s109 = ssub.s32 %s17, 1
      $region12: #{tpu_custom_call.1} parent=5 // pred_fallthru
        _
      %p110 = scmp.lt.s32.totalorder %s17, 4
      // Predicated region
      $region13: #{tpu_custom_call.1} parent=5 // pred_check
        %p111 = pneg %p110
      $region14: #{tpu_custom_call.1} parent=5 // pred_check_branch
        %113 = sbr.rel (%p111) target = $region16
      $region15: #{tpu_custom_call.1} parent=5 // pred_region
        // Predicated region
        $region17: #{tpu_custom_call.1} parent=15 // pred_check
          %p114 = pneg %p37
        $region18: #{tpu_custom_call.1} parent=15 // pred_check_branch
          %116 = sbr.rel (%p114) target = $region20
        $region19: #{tpu_custom_call.1} parent=15 // pred_region
          %s117 = sand.u32 %s27, 1
          %s118 = scalar_lea.sflag [#allocation3], %s117
          %s119 = sand.u32 %s27, 1
          %s120 = smul.addr %s119, 32
          %s121 = scalar_lea.vmem [#allocation2], %s120
          %s122 = smul.u32 2, %s17
          %124 = vsyncadd %s118, 0
          %s125 = smul.addr %s122, 2
          %s126 = smul.addr %s125, 8
          %s127 = scalar_lea.hbm %s0, %s126
          %s128 = sshll.u32 %s127, 4
          %s129 = int_to_ptr.hbm [resolvable:$true] %s128
          %s130 = sshll.u32 %s121, 4
          %s131 = int_to_ptr.vmem [resolvable:$true] %s130
          %136 = dma.hbm_to_vmem [thread:$0]  %s129, 512, %s131, %s118, 128, 128, 8
        $region20: #{tpu_custom_call.1} parent=15 // pred_fallthru
          _
        // Predicated region
        $region21: #{tpu_custom_call.1} parent=15 // pred_check
          %p137 = pneg %p63
        $region22: #{tpu_custom_call.1} parent=15 // pred_check_branch
          %139 = sbr.rel (%p137) target = $region24
        $region23: #{tpu_custom_call.1} parent=15 // pred_region
          %s140 = sand.u32 %s53, 1
          %s141 = scalar_lea.sflag [#allocation6], %s140
          %s142 = sand.u32 %s53, 1
          %s143 = smul.addr %s142, 32
          %s144 = scalar_lea.vmem [#allocation5], %s143
          %s145 = smul.u32 2, %s17
          %147 = vsyncadd %s141, 0
          %s148 = smul.addr %s145, 2
          %s149 = smul.addr %s148, 8
          %s150 = scalar_lea.hbm %s1, %s149
          %s151 = sshll.u32 %s150, 4
          %s152 = int_to_ptr.hbm [resolvable:$true] %s151
          %s153 = sshll.u32 %s144, 4
          %s154 = int_to_ptr.vmem [resolvable:$true] %s153
          %159 = dma.hbm_to_vmem [thread:$0]  %s152, 512, %s154, %s141, 128, 128, 8
        $region24: #{tpu_custom_call.1} parent=15 // pred_fallthru
          _
      $region16: #{tpu_custom_call.1} parent=5 // pred_fallthru
        _
      %p160 = scmp.le.s32.totalorder 1, %s17
      %p161 = scmp.lt.s32.totalorder %s17, 5
      %p162 = pnand %p160, %p161
      %p163 = pneg %p162
      // Predicated region
      $region25: #{tpu_custom_call.1} parent=5 // pred_check
        _
      $region26: #{tpu_custom_call.1} parent=5 // pred_check_branch
        %165 = sbr.rel (%p162) target = $region28
      $region27: #{tpu_custom_call.1} parent=5 // pred_region
        %s166 = ssub.s32 %s17, 1
        %s167 = sand.u32 %s30, 1
        %s168 = scalar_lea.sflag [#allocation3], %s167
        %s169 = sand.u32 %s30, 1
        %s170 = smul.addr %s169, 32
        %s171 = scalar_lea.vmem [#allocation2], %s170
        // Predicated region
        $region29: #{tpu_custom_call.1} parent=27 // pred_check
          %p172 = pneg %p43
        $region30: #{tpu_custom_call.1} parent=27 // pred_check_branch
          %174 = sbr.rel (%p172) target = $region32
        $region31: #{tpu_custom_call.1} parent=27 // pred_region
          %176 = dma.done %s168, 512
        $region32: #{tpu_custom_call.1} parent=27 // pred_fallthru
          _
        %s177 = sand.u32 %s56, 1
        %s178 = scalar_lea.sflag [#allocation6], %s177
        %s179 = sand.u32 %s56, 1
        %s180 = smul.addr %s179, 32
        %s181 = scalar_lea.vmem [#allocation5], %s180
        // Predicated region
        $region33: #{tpu_custom_call.1} parent=27 // pred_check
          %p182 = pneg %p69
        $region34: #{tpu_custom_call.1} parent=27 // pred_check_branch
          %184 = sbr.rel (%p182) target = $region36
        $region35: #{tpu_custom_call.1} parent=27 // pred_region
          %186 = dma.done %s178, 512
        $region36: #{tpu_custom_call.1} parent=27 // pred_fallthru
          _
        %s187 = sand.u32 %s30, 1
        %s188 = scalar_lea.sflag [#allocation3], %s187
        %s189 = sand.u32 %s30, 1
        %s190 = smul.addr %s189, 32
        %s191 = scalar_lea.vmem [#allocation2], %s190
        %p192 = pneg %p43
        %p193 = pneg %p40
        %s194 = sand.u32 %s56, 1
        %s195 = scalar_lea.sflag [#allocation6], %s194
        %s196 = sand.u32 %s56, 1
        %s197 = smul.addr %s196, 32
        %s198 = scalar_lea.vmem [#allocation5], %s197
        %p199 = pneg %p69
        %p200 = pneg %p66
        %p201 = pneg %p95
        %p202 = pneg %p92
        %s203 = sand.u32 %s82, 1
        %s204 = scalar_lea.sflag [#allocation4], %s203
        %s205 = sand.u32 %s82, 1
        %s206 = smul.addr %s205, 8
        %s207 = scalar_lea.vmem [#allocation7], %s206
        %s208 = smul.u32 2, %s22
        %s209 = smul.u32 2, %s22
        %v210 = vld [vmem:[%s171] sm:$0xff]
        %v211 = vld [vmem:[%s171 + $0x8] sm:$0xff]
        %v212 = vld [vmem:[%s171 + $0x10] sm:$0xff]
        %v213 = vld [vmem:[%s171 + $0x18] sm:$0xff]
        %v214 = vld [vmem:[%s181] sm:$0xff]
        %v215 = vld [vmem:[%s181 + $0x8] sm:$0xff]
        %v216 = vld [vmem:[%s181 + $0x10] sm:$0xff]
        %v217 = vld [vmem:[%s181 + $0x18] sm:$0xff]
        %v218 = vsub.f32 %v210, %v214
        %v219 = vsub.f32 %v211, %v215
        %v220 = vsub.f32 %v212, %v216
        %v221 = vsub.f32 %v213, %v217
        %v222 = vmul.f32 %v218, 2.0
        %v223 = vmul.f32 %v220, 2.0
        %v226 = vrot.slane %v218, 1
        %v227 = vrot.slane %v220, 1
        %v230 = vadd.f32 %v222, %v226
        %v231 = vadd.f32 %v223, %v227
        %v232 = vmul.f32 %v219, 2.0
        %v233 = vmul.f32 %v221, 2.0
        %vm238 = vcmask 1046528
        %v239 = vrot.slane %v222, 1
        %v240 = vrot.slane %v232, 1
        %v241 = vsel %vm238, %v239, %v240
        %v242 = vrot.slane %v223, 1
        %v243 = vrot.slane %v233, 1
        %v244 = vsel %vm238, %v242, %v243
        %v249 = vadd.f32 %v218, %v241
        %v250 = vadd.f32 %v219, %v240
        %v251 = vadd.f32 %v220, %v244
        %v252 = vadd.f32 %v221, %v243
        %vm255 = vcmask 1045504
        %v256 = vrot.slane %v218, 2
        %v257 = vrot.slane %v219, 2
        %v258 = vsel %vm255, %v256, %v257
        %v259 = vrot.slane %v220, 2
        %v260 = vrot.slane %v221, 2
        %v261 = vsel %vm255, %v259, %v260
        %v266 = vadd.f32 %v249, %v258
        %v267 = vadd.f32 %v250, %v257
        %v268 = vadd.f32 %v251, %v261
        %v269 = vadd.f32 %v252, %v260
        %vm274 = vcmask 1040384
        %v275 = vrot.slane %v266, 7
        %v276 = vrot.slane %v267, 7
        %v277 = vsel %vm274, %v275, %v276
        %v278 = vrot.slane %v268, 7
        %v279 = vrot.slane %v269, 7
        %v280 = vsel %vm274, %v278, %v279
        %v287 = vrot.slane %v250, 7
        %v288 = vrot.slane %v252, 7
        %v291 = vsel %vm274, %v230, %v275
        %v292 = vsel %vm274, %v231, %v278
        %v293 = vsel %vm238, %v277, %v287
        %v294 = vsel %vm238, %v280, %v288
        %v295 = vsub.f32 0.0, %v218
        %v296 = vsub.f32 0.0, %v220
        %v297 = vsub.f32 %v218, %v258
        %v298 = vsub.f32 %v219, %v257
        %v299 = vsub.f32 %v220, %v261
        %v300 = vsub.f32 %v221, %v260
        %v303 = vrot.slane %v295, 1
        %v304 = vrot.slane %v296, 1
        %v311 = vrot.slane %v297, 7
        %v312 = vrot.slane %v298, 7
        %v313 = vsel %vm274, %v311, %v312
        %v314 = vrot.slane %v299, 7
        %v315 = vrot.slane %v300, 7
        %v316 = vsel %vm274, %v314, %v315
        %v321 = vrot.slane %v219, 7
        %v322 = vrot.slane %v221, 7
        %v325 = vsel %vm274, %v303, %v311
        %v326 = vsel %vm274, %v304, %v314
        %v327 = vsel %vm238, %v313, %v321
        %v328 = vsel %vm238, %v316, %v322
        %333 = vrot.lane.b32.xlu0 %v291, 126
        %v334 = vpop.permute.xlu0 %333
        %335 = vrot.lane.b32.xlu0 %v293, 126
        %v336 = vpop.permute.xlu0 %335
        %337 = vrot.lane.b32.xlu0 %v292, 126
        %v338 = vpop.permute.xlu0 %337
        %339 = vrot.lane.b32.xlu0 %v294, 126
        %v340 = vpop.permute.xlu0 %339
        %v345 = vsub.f32 %v291, %v334
        %v346 = vsub.f32 %v293, %v336
        %v347 = vsub.f32 %v292, %v338
        %v348 = vsub.f32 %v294, %v340
        %v349 = vmul.f32 %v325, 2.0
        %v350 = vmul.f32 %v327, 2.0
        %v351 = vmul.f32 %v326, 2.0
        %v352 = vmul.f32 %v328, 2.0
        %357 = vrot.lane.b32.xlu0 %v349, 127
        %v358 = vpop.permute.xlu0 %357
        %359 = vrot.lane.b32.xlu0 %v350, 127
        %v360 = vpop.permute.xlu0 %359
        %361 = vrot.lane.b32.xlu0 %v351, 127
        %v362 = vpop.permute.xlu0 %361
        %363 = vrot.lane.b32.xlu0 %v352, 127
        %v364 = vpop.permute.xlu0 %363
        %v369 = vadd.f32 %v325, %v358
        %v370 = vadd.f32 %v327, %v360
        %v371 = vadd.f32 %v326, %v362
        %v372 = vadd.f32 %v328, %v364
        %377 = vrot.lane.b32.xlu0 %v325, 126
        %v378 = vpop.permute.xlu0 %377
        %379 = vrot.lane.b32.xlu0 %v327, 126
        %v380 = vpop.permute.xlu0 %379
        %381 = vrot.lane.b32.xlu0 %v326, 126
        %v382 = vpop.permute.xlu0 %381
        %383 = vrot.lane.b32.xlu0 %v328, 126
        %v384 = vpop.permute.xlu0 %383
        %v389 = vadd.f32 %v369, %v378
        %v390 = vadd.f32 %v370, %v380
        %v391 = vadd.f32 %v371, %v382
        %v392 = vadd.f32 %v372, %v384
        %v393 = vsub.f32 0.0, %v291
        %v394 = vsub.f32 0.0, %v293
        %v395 = vsub.f32 0.0, %v292
        %v396 = vsub.f32 0.0, %v294
        %397 = vrot.lane.b32.xlu0 %v325, 127
        %v398 = vpop.permute.xlu0 %397
        %399 = vrot.lane.b32.xlu0 %v327, 127
        %v400 = vpop.permute.xlu0 %399
        %401 = vrot.lane.b32.xlu0 %v326, 127
        %v402 = vpop.permute.xlu0 %401
        %403 = vrot.lane.b32.xlu0 %v328, 127
        %v404 = vpop.permute.xlu0 %403
        %v409 = vadd.f32 %v349, %v398
        %v410 = vadd.f32 %v350, %v400
        %v411 = vadd.f32 %v351, %v402
        %v412 = vadd.f32 %v352, %v404
        %v413 = vand.u32 2147483647, %v345
        %v414 = vand.u32 2147483647, %v346
        %v415 = vand.u32 2147483647, %v347
        %v416 = vand.u32 2147483647, %v348
        %v417 = vand.u32 2147483647, %v389
        %v418 = vand.u32 2147483647, %v390
        %v419 = vand.u32 2147483647, %v391
        %v420 = vand.u32 2147483647, %v392
        %v421 = vadd.f32 %v413, %v417
        %v422 = vadd.f32 %v414, %v418
        %v423 = vadd.f32 %v415, %v419
        %v424 = vadd.f32 %v416, %v420
        %v425 = vand.u32 2147483647, %v393
        %v426 = vand.u32 2147483647, %v394
        %v427 = vand.u32 2147483647, %v395
        %v428 = vand.u32 2147483647, %v396
        %v429 = vand.u32 2147483647, %v409
        %v430 = vand.u32 2147483647, %v410
        %v431 = vand.u32 2147483647, %v411
        %v432 = vand.u32 2147483647, %v412
        %437 = vrot.lane.b32.xlu0 %v429, 1
        %v438 = vpop.permute.xlu0 %437
        %439 = vrot.lane.b32.xlu0 %v430, 1
        %v440 = vpop.permute.xlu0 %439
        %441 = vrot.lane.b32.xlu0 %v431, 1
        %v442 = vpop.permute.xlu0 %441
        %443 = vrot.lane.b32.xlu0 %v432, 1
        %v444 = vpop.permute.xlu0 %443
        %v449 = vadd.f32 %v425, %v438
        %v450 = vadd.f32 %v426, %v440
        %v451 = vadd.f32 %v427, %v442
        %v452 = vadd.f32 %v428, %v444
        %v453 = vand.u32 2147483647, %v291
        %v454 = vand.u32 2147483647, %v293
        %v455 = vand.u32 2147483647, %v292
        %v456 = vand.u32 2147483647, %v294
        %v457 = vand.u32 2147483647, %v369
        %v458 = vand.u32 2147483647, %v370
        %v459 = vand.u32 2147483647, %v371
        %v460 = vand.u32 2147483647, %v372
        %v461 = vadd.f32 %v453, %v457
        %v462 = vadd.f32 %v454, %v458
        %v463 = vadd.f32 %v455, %v459
        %v464 = vadd.f32 %v456, %v460
        %469 = vrot.lane.b32.xlu0 %v449, 13
        %v470 = vpop.permute.xlu0 %469
        %471 = vrot.lane.b32.xlu0 %v450, 13
        %v472 = vpop.permute.xlu0 %471
        %473 = vrot.lane.b32.xlu0 %v451, 13
        %v474 = vpop.permute.xlu0 %473
        %475 = vrot.lane.b32.xlu0 %v452, 13
        %v476 = vpop.permute.xlu0 %475
        %485 = vrot.lane.b32.xlu0 %v461, 1
        %v486 = vpop.permute.xlu0 %485
        %487 = vrot.lane.b32.xlu0 %v462, 1
        %v488 = vpop.permute.xlu0 %487
        %489 = vrot.lane.b32.xlu0 %v463, 1
        %v490 = vpop.permute.xlu0 %489
        %491 = vrot.lane.b32.xlu0 %v464, 1
        %v492 = vpop.permute.xlu0 %491
        %vm497 = vcmask 113664
        %v498 = vsel %vm497, %v421, %v470
        %v499 = vsel %vm497, %v422, %v472
        %v500 = vsel %vm497, %v423, %v474
        %v501 = vsel %vm497, %v424, %v476
        %vm502 = vcmask 121856
        %v503 = vsel %vm502, %v498, %v486
        %v504 = vsel %vm502, %v499, %v488
        %v505 = vsel %vm502, %v500, %v490
        %v506 = vsel %vm502, %v501, %v492
        %vm507 = vcmask 130048
        %v508 = vsel %vm507, %v503, 0.0
        %v509 = vsel %vm507, %v505, 0.0
        %v510 = vadd.f32 %v508, %v509
        %v511 = vsel %vm507, %v504, 0.0
        %v512 = vsel %vm507, %v506, 0.0
        %v513 = vadd.f32 %v511, %v512
        %v514 = vadd.f32 %v510, %v513
        %515 = vst [vmem:[%s207] sm:$0xff] 0.0
        %516 = vst.msk [vmem:[%s207] sm:$0xff] %vm507, %v514
        %s517 = sand.u32 %s82, 1
        %s518 = scalar_lea.sflag [#allocation4], %s517
        %s519 = sand.u32 %s82, 1
        %s520 = smul.addr %s519, 8
        %s521 = scalar_lea.vmem [#allocation7], %s520
        // Predicated region
        $region37: #{tpu_custom_call.1} parent=27 // pred_check
          %p522 = pneg %p92
        $region38: #{tpu_custom_call.1} parent=27 // pred_check_branch
          %524 = sbr.rel (%p522) target = $region40
        $region39: #{tpu_custom_call.1} parent=27 // pred_region
          %526 = vsyncadd %s518, 0
          %s527 = smul.addr %s22, 8
          %s528 = scalar_lea.hbm %s2, %s527
          %s530 = sshll.u32 %s521, 4
          %s531 = int_to_ptr.vmem [resolvable:$true] %s530
          %s532 = sshll.u32 %s528, 4
          %s533 = int_to_ptr.hbm [resolvable:$true] %s532
          %535 = dma.vmem_to_hbm [thread:$0]  %s531, 128, %s533, %s518
        $region40: #{tpu_custom_call.1} parent=27 // pred_fallthru
          _
      $region28: #{tpu_custom_call.1} parent=5 // pred_fallthru
        _
      %p536 = scmp.le.s32.totalorder 2, %s17
      // Predicated region
      $region41: #{tpu_custom_call.1} parent=5 // pred_check
        %p537 = pneg %p536
      $region42: #{tpu_custom_call.1} parent=5 // pred_check_branch
        %539 = sbr.rel (%p537) target = $region44
      $region43: #{tpu_custom_call.1} parent=5 // pred_region
        %s540 = ssub.s32 %s17, 2
        // Predicated region
        $region45: #{tpu_custom_call.1} parent=43 // pred_check
          %p541 = pneg %p98
        $region46: #{tpu_custom_call.1} parent=43 // pred_check_branch
          %543 = sbr.rel (%p541) target = $region48
        $region47: #{tpu_custom_call.1} parent=43 // pred_region
          %s544 = sand.u32 %s83, 1
          %s545 = scalar_lea.sflag [#allocation4], %s544
          %s546 = sand.u32 %s83, 1
          %s547 = smul.addr %s546, 8
          %s548 = scalar_lea.vmem [#allocation7], %s547
          %550 = dma.done %s545, 128
        $region48: #{tpu_custom_call.1} parent=43 // pred_fallthru
          _
      $region44: #{tpu_custom_call.1} parent=5 // pred_fallthru
        _
    $region6: #{tpu_custom_call.1} parent=1 // loop_footer
      %s21 = sadd.s32 1, %s17
    $region7: #{tpu_custom_call.1} parent=1 // loop_footer_branch
      %16 = sbr.rel target = $region3
    $region8: #{tpu_custom_call.1} parent=1 // loop_exit
      _
    %551 = vsyncpa [#allocation3], 1
    %s552 = scalar_lea.sflag [#allocation3], 1
    %553 = vsyncpa %s552, 1
    %554 = vsyncpa [#allocation6], 1
    %s555 = scalar_lea.sflag [#allocation6], 1
    %556 = vsyncpa %s555, 1
    %557 = vsyncpa [#allocation4], 1
    %s558 = scalar_lea.sflag [#allocation4], 1
    %559 = vsyncpa %s558, 1

</llo_original>
